<compile_context>
chip_gen: v7x
topology: tpu7x:2x2x1
jax: 0.10.0
libtpu: 0.0.40
codegen_flags: <defaults>
</compile_context>

<pallas_src>
import functools

import jax
import jax.numpy as jnp
from jax import lax
from jax.experimental import pallas as pl
from jax.experimental.pallas import tpu as pltpu


def _round_up(x, m):
    return (x + m - 1) // m * m


def _pick_tile_m(m):
    """M tile: big aligned tiles, but always >= 2 grid steps for v7x's 2 TCs."""
    if m >= 1024:
        return 512
    return max(8, _round_up((m + 1) // 2, 8))


def _vmem_limit_bytes():
    """Generation-aware scoped-VMEM limit (safe fallback if detection fails)."""
    try:
        kind = jax.devices()[0].device_kind.lower()
    except Exception:
        kind = ""
    if "v7" in kind or "tpu7" in kind:
        return 48 * 1024 * 1024      # v7x: 64 MiB physical -> leave headroom
    if "v5" in kind or "v6" in kind:
        return 64 * 1024 * 1024      # v5e/v6e: 128 MiB physical
    return 48 * 1024 * 1024          # unknown: conservative


def _matmul_kernel(p_ref, w_ref, y_ref):
    """One M-tile per grid step.

    p_ref : (TILE_M, K_pad)  bf16 im2col patch rows ([xr|xi] channels per tap)
    w_ref : (K_pad, OUTP)    bf16 stacked complex weights [[wr,wi],[-wi,wr]]
    y_ref : (TILE_M, OUTP)   f32  [yr | yi | zero-pad]
    """
    y_ref[...] = jnp.dot(p_ref[...], w_ref[...],
                         preferred_element_type=jnp.float32)


@jax.jit
def single_layer_forward(xr_nchw, xi_nchw, wr, wi):
    """xr_nchw, xi_nchw: (N, C, H, W) float32.
    wr, wi: (G, C, 3, 3) float32 (PyTorch Conv2d OIHW layout, bias=False).
    Returns (N, C+G, H, W) real and imag outputs (NCHW), matching PyTorch."""
    N, C, H, W = xr_nchw.shape
    G = wr.shape[0]
    C2 = 2 * C
    K = 9 * C2                                   # contraction depth 18C
    K_pad = _round_up(max(K, 128), 128)          # 128-aligned contraction
    OUTP = _round_up(max(2 * G, 128), 128)       # lane-dense output columns
    M = N * H * W                                # batch folded into M
    tile_m = _pick_tile_m(M)
    M_pad = _round_up(M, tile_m)

    # ---- XLA-side prep (cheap, lane-dense; no in-kernel relayout work) ----
    # complex_relu then NHWC stack of [real | imag] channels, cast to bf16.
    x = jnp.concatenate(
        [jnp.transpose(xr_nchw, (0, 2, 3, 1)),
         jnp.transpose(xi_nchw, (0, 2, 3, 1))], axis=-1)          # (N, H, W, 2C)
    x = jnp.maximum(x, jnp.float32(0.0)).astype(jnp.bfloat16)
    xp = jnp.pad(x, ((0, 0), (1, 1), (1, 1), (0, 0)))             # zero pad=1

    # im2col: 9 shifted windows concatenated along channels (tap t=(kh,kw)).
    wins = [xp[:, dh:dh + H, dw:dw + W, :] for dh in range(3) for dw in range(3)]
    patch = jnp.concatenate(wins, axis=-1).reshape(M, K)          # (M, 18C)
    patch = jnp.pad(patch, ((0, M_pad - M), (0, K_pad - K)))      # zero pad

    # Stacked complex weight: per tap t the (2C, 2G) block
    #   [[wr_t, wi_t],
    #    [-wi_t, wr_t]]
    # rows ordered to match patch columns ([xr chans | xi chans] per tap).
    wr_k = jnp.transpose(wr, (2, 3, 1, 0)).reshape(9, C, G)       # (tap, cin, cout)
    wi_k = jnp.transpose(wi, (2, 3, 1, 0)).reshape(9, C, G)
    top = jnp.concatenate([wr_k, wi_k], axis=-1)                  # xr-row block
    bot = jnp.concatenate([-wi_k, wr_k], axis=-1)                 # xi-row block
    w_stack = jnp.concatenate([top, bot], axis=1).reshape(K, 2 * G)
    w_stack = jnp.pad(w_stack, ((0, K_pad - K), (0, OUTP - 2 * G)))
    w_stack = w_stack.astype(jnp.bfloat16)                        # (K_pad, OUTP)

    # ---- Pallas: plain tiled matmul on the MXU (bf16 in, f32 accumulate) ----
    y = pl.pallas_call(
        _matmul_kernel,
        out_shape=jax.ShapeDtypeStruct((M_pad, OUTP), jnp.float32),
        grid_spec=pltpu.PrefetchScalarGridSpec(
            num_scalar_prefetch=0,
            grid=(M_pad // tile_m,),
            in_specs=[
                pl.BlockSpec((tile_m, K_pad), lambda i: (i, 0)),
                pl.BlockSpec((K_pad, OUTP), lambda i: (0, 0)),
            ],
            out_specs=pl.BlockSpec((tile_m, OUTP), lambda i: (i, 0)),
        ),
        compiler_params=pltpu.CompilerParams(
            dimension_semantics=("parallel",),
            vmem_limit_bytes=_vmem_limit_bytes(),
        ),
    )(patch, w_stack)

    # ---- Glue (cheap XLA): slice live rows/cols, NHWC->NCHW, channel concat.
    y = y[:M, :2 * G].reshape(N, H, W, 2 * G)
    yr = jnp.transpose(y[..., :G], (0, 3, 1, 2))                  # (N, G, H, W)
    yi = jnp.transpose(y[..., G:], (0, 3, 1, 2))
    out_r = jnp.concatenate([xr_nchw, yr], axis=1)
    out_i = jnp.concatenate([xi_nchw, yi], axis=1)
    return out_r, out_i


def _reference(xr, xi, wr, wi):
    """Pure-JAX f32 reference of the PyTorch forward (NCHW conv)."""
    dn = lax.conv_dimension_numbers(xr.shape, wr.shape, ("NCHW", "OIHW", "NCHW"))
    conv = lambda x, w: lax.conv_general_dilated(
        x, w, window_strides=(1, 1), padding=((1, 1), (1, 1)),
        dimension_numbers=dn)
    xr_a = jnp.maximum(xr, 0.0)
    xi_a = jnp.maximum(xi, 0.0)
    yr = conv(xr_a, wr) - conv(xi_a, wi)
    yi = conv(xi_a, wr) + conv(xr_a, wi)
    return (jnp.concatenate([xr, yr], axis=1),
            jnp.concatenate([xi, yi], axis=1))


if __name__ == "__main__":
    # Small shapes consistent with SingleLayer(nChannels=4, growthRate=8).
    N, C, H, W = 2, 4, 16, 16
    G = 8

    key = jax.random.PRNGKey(0)
    k1, k2, k3, k4 = jax.random.split(key, 4)
    xr = jax.random.normal(k1, (N, C, H, W), dtype=jnp.float32)
    xi = jax.random.normal(k2, (N, C, H, W), dtype=jnp.float32)
    # Deterministic synthetic weights for conv_r / conv_i (bias=False).
    wr = 0.1 * jax.random.normal(k3, (G, C, 3, 3), dtype=jnp.float32)
    wi = 0.1 * jax.random.normal(k4, (G, C, 3, 3), dtype=jnp.float32)

    out_r, out_i = single_layer_forward(xr, xi, wr, wi)
    jax.block_until_ready((out_r, out_i))

    ref_r, ref_i = _reference(xr, xi, wr, wi)
    assert out_r.shape == (N, C + G, H, W) and out_i.shape == (N, C + G, H, W)
    # bf16 matmul operands (f32 accumulation) -> loosened tolerance vs f32 ref.
    assert jnp.allclose(out_r, ref_r, atol=5e-2, rtol=5e-2)
    assert jnp.allclose(out_i, ref_i, atol=5e-2, rtol=5e-2)

    print("KERNEL_OK")
</pallas_src>

<mosaic_0001>
module attributes {stable_mosaic.version = 11 : i64} {
  func.func @_matmul_kernel(%arg0: i32, %arg1: memref<256x128xbf16, #tpu.memory_space<vmem>>, %arg2: memref<128x128xbf16, #tpu.memory_space<vmem>>, %arg3: memref<256x128xf32, #tpu.memory_space<vmem>>) attributes {dimension_semantics = [#tpu.dimension_semantics<parallel>], iteration_bounds = array<i64: 2>, scalar_prefetch = 0 : i64, scratch_operands = 0 : i64, tpu.core_type = #tpu.core_type<tc>, window_params = [{transform_indices = @transform_0, window_bounds = array<i64: 256, 128>}, {pipeline_mode = #tpu.pipeline_mode<synchronous>, transform_indices = @transform_1, window_bounds = array<i64: 128, 128>}, {transform_indices = @transform_2, window_bounds = array<i64: 256, 128>}]} {
    %c0 = arith.constant 0 : index
    %c0_0 = arith.constant 0 : index
    %0 = vector.load %arg1[%c0, %c0_0] : memref<256x128xbf16, #tpu.memory_space<vmem>>, vector<256x128xbf16>
    %c0_1 = arith.constant 0 : index
    %c0_2 = arith.constant 0 : index
    %1 = vector.load %arg2[%c0_1, %c0_2] : memref<128x128xbf16, #tpu.memory_space<vmem>>, vector<128x128xbf16>
    %cst = arith.constant dense<0.000000e+00> : vector<256x128xf32>
    %2 = tpu.matmul %0, %1, %cst {dimension_numbers = #tpu.dot_dimension_numbers<[1], [0], [0], [1], [0, 0, 1, 1], [], []>} : vector<256x128xbf16>, vector<128x128xbf16>, vector<256x128xf32> -> vector<256x128xf32>
    %c0_3 = arith.constant 0 : index
    %c0_4 = arith.constant 0 : index
    %3 = vector.load %arg3[%c0_3, %c0_4] : memref<256x128xf32, #tpu.memory_space<vmem>>, vector<256x128xf32>
    tpu.vector_store %arg3[%c0_3, %c0_4], %2 {strides = array<i32>} : memref<256x128xf32, #tpu.memory_space<vmem>>, vector<256x128xf32>,
    return
  }
  func.func @transform_0(%arg0: i32) -> (i32, i32) {
    %c0_i32 = arith.constant 0 : i32
    %c0_i32_0 = arith.constant 0 : i32
    return %arg0, %c0_i32 : i32, i32
  }
  func.func @transform_1(%arg0: i32) -> (i32, i32) {
    %c0_i32 = arith.constant 0 : i32
    %c0_i32_0 = arith.constant 0 : i32
    %c0_i32_1 = arith.constant 0 : i32
    return %c0_i32, %c0_i32_0 : i32, i32
  }
  func.func @transform_2(%arg0: i32) -> (i32, i32) {
    %c0_i32 = arith.constant 0 : i32
    %c0_i32_0 = arith.constant 0 : i32
    return %arg0, %c0_i32 : i32, i32
  }
}

</mosaic_0001>

<llo_original>
// kernel: single_layer_forward.1
$region0: #{single_layer_forward.1}
  #allocation0 [shape = 'u32[]', space=smem, size = 0x4, offset = 0x4, fixed_abs, tag = 'smem constant byte address 0x4 - core index']
  #allocation1 [shape = 'u32[144,128]{1,0:T(1,128)}', space=vmem, size = 0x12000, scoped, tag = 'internal scratch']
  %s0 = inlined_call_operand.vmem [shape: bf16[512,128], index: 0, kind: input, shape index: {}]
  %s1 = inlined_call_operand.vmem [shape: bf16[128,128], index: 1, kind: input, shape index: {}]
  %s2 = inlined_call_operand.vmem [shape: f32[512,128], index: 2, kind: output, shape index: {}]
  %s3 = sld [smem:[#allocation0]]
  $region41: #{single_layer_forward.1} parent=0
    _
  %s5 = ssub.s32 1, %s3
  %s6 = scalar_select 0, %s5, %s3
  loop: start=0, step=1, limit=4
  $region2: #{single_layer_forward.1} parent=0 // loop_pre_header
    _
  $region3: #{single_layer_forward.1} parent=0 // loop_header
    %s8 = sphi 0, %s12
    %p9 = scmp.ge.s32.totalorder %s8, 4
    %s18 = sphi 0, %s20
    %s21 = sphi 0, %s18
    %s22 = sphi 0, %s21
    %s38 = sphi 0, %s22
    %s42 = sphi 0, %s42
    %s44 = sphi 0, %s42
    %s45 = sphi 0, %s44
    %s59 = sphi 0, %s45
    %s65 = sphi 0, %s67
    %s68 = sphi 0, %s65
    %s69 = sphi 0, %s68
    %s85 = sphi 0, %s69
  $region4: #{single_layer_forward.1} parent=0 // loop_header_branch
    %11 = sbr.rel (%p9) target = $region8
  $region5: #{single_layer_forward.1} parent=0 // loop_body
    %s13 = ssub.s32 %s8, 1
    %s14 = ssub.s32 %s8, 2
    %s15 = sadd.s32 %s8, 1
    %s16 = ssub.s32 %s8, %s15
    %p17 = scmp.eq.s32.totalorder %s16, 0
    %s19 = sadd.s32 %s18, 1
    %s20 = scalar_select %p17, %s18, %s19
    %p23 = pneg %p17
    %p24 = scmp.eq.s32.totalorder %s8, 1
    %p25 = por %p23, %p24
    %p26 = scmp.ne.s32.totalorder %s18, %s21
    %p27 = scmp.eq.s32.totalorder %s8, 0
    %p28 = por %p26, %p27
    %p29 = scmp.ne.s32.totalorder %s18, %s21
    %p30 = scmp.eq.s32.totalorder %s13, 1
    %p31 = por %p29, %p30
    %p32 = scmp.ne.s32.totalorder %s21, %s22
    %p33 = scmp.eq.s32.totalorder %s13, 0
    %p34 = por %p32, %p33
    %p35 = scmp.ne.s32.totalorder %s21, %s22
    %p36 = scmp.eq.s32.totalorder %s14, 1
    %p37 = por %p35, %p36
    %p39 = scmp.ne.s32.totalorder %s22, %s38
    %p40 = scmp.eq.s32.totalorder %s14, 0
    %p41 = por %p39, %p40
    %s43 = sadd.s32 %s42, 1
    %p46 = scmp.eq.s32.totalorder %s8, 1
    %p47 = scmp.ne.s32.totalorder %s42, %s44
    %p48 = scmp.eq.s32.totalorder %s8, 0
    %p49 = por %p47, %p48
    %p50 = scmp.ne.s32.totalorder %s42, %s44
    %p51 = scmp.eq.s32.totalorder %s13, 1
    %p52 = por %p50, %p51
    %p53 = scmp.ne.s32.totalorder %s44, %s45
    %p54 = scmp.eq.s32.totalorder %s13, 0
    %p55 = por %p53, %p54
    %p56 = scmp.ne.s32.totalorder %s44, %s45
    %p57 = scmp.eq.s32.totalorder %s14, 1
    %p58 = por %p56, %p57
    %p60 = scmp.ne.s32.totalorder %s45, %s59
    %p61 = scmp.eq.s32.totalorder %s14, 0
    %p62 = por %p60, %p61
    %s63 = ssub.s32 %s8, %s15
    %p64 = scmp.eq.s32.totalorder %s63, 0
    %s66 = sadd.s32 %s65, 1
    %s67 = scalar_select %p64, %s65, %s66
    %p70 = pneg %p64
    %p71 = scmp.eq.s32.totalorder %s8, 1
    %p72 = por %p70, %p71
    %p73 = scmp.ne.s32.totalorder %s65, %s68
    %p74 = scmp.eq.s32.totalorder %s8, 0
    %p75 = por %p73, %p74
    %p76 = scmp.ne.s32.totalorder %s65, %s68
    %p77 = scmp.eq.s32.totalorder %s13, 1
    %p78 = por %p76, %p77
    %p79 = scmp.ne.s32.totalorder %s68, %s69
    %p80 = scmp.eq.s32.totalorder %s13, 0
    %p81 = por %p79, %p80
    %p82 = scmp.ne.s32.totalorder %s68, %s69
    %p83 = scmp.eq.s32.totalorder %s14, 1
    %p84 = por %p82, %p83
    %p86 = scmp.ne.s32.totalorder %s69, %s85
    %p87 = scmp.eq.s32.totalorder %s14, 0
    %p88 = por %p86, %p87
    %p89 = scmp.le.s32.totalorder 1, %s8
    %p90 = scmp.lt.s32.totalorder %s8, 3
    %p91 = pnand %p89, %p90
    %p92 = pneg %p91
    // Predicated region
    $region9: #{single_layer_forward.1} parent=5 // pred_check
      _
    $region10: #{single_layer_forward.1} parent=5 // pred_check_branch
      %94 = sbr.rel (%p91) target = $region12
    $region11: #{single_layer_forward.1} parent=5 // pred_region
      %s95 = ssub.s32 %s8, 1
      // Predicated region
      $region13: #{single_layer_forward.1} parent=11 // pred_check
        %p96 = pneg %p55
      $region14: #{single_layer_forward.1} parent=11 // pred_check_branch
        %98 = sbr.rel (%p96) target = $region16
      $region15: #{single_layer_forward.1} parent=11 // pred_region
        _
      $region16: #{single_layer_forward.1} parent=11 // pred_fallthru
        _
    $region12: #{single_layer_forward.1} parent=5 // pred_fallthru
      _
    %p99 = scmp.lt.s32.totalorder %s8, 2
    // Predicated region
    $region17: #{single_layer_forward.1} parent=5 // pred_check
      %p100 = pneg %p99
    $region18: #{single_layer_forward.1} parent=5 // pred_check_branch
      %102 = sbr.rel (%p100) target = $region20
    $region19: #{single_layer_forward.1} parent=5 // pred_region
      // Predicated region
      $region21: #{single_layer_forward.1} parent=19 // pred_check
        %p103 = pneg %p28
      $region22: #{single_layer_forward.1} parent=19 // pred_check_branch
        %105 = sbr.rel (%p103) target = $region24
      $region23: #{single_layer_forward.1} parent=19 // pred_region
        %s106 = smul.u32 32, %s8
        %p107 = scmp.lt.s32.totalorder %s106, 63
        %s108 = scalar_select %p107, %s106, 63
        %s109 = smul.addr %s108, 4
        %s110 = scalar_lea.vmem %s0, %s109
        %s111 = smul.u32 32, %s8
      $region24: #{single_layer_forward.1} parent=19 // pred_fallthru
        _
    $region20: #{single_layer_forward.1} parent=5 // pred_fallthru
      _
    %p112 = scmp.le.s32.totalorder 1, %s8
    %p113 = scmp.lt.s32.totalorder %s8, 3
    %p114 = pnand %p112, %p113
    %p115 = pneg %p114
    // Predicated region
    $region25: #{single_layer_forward.1} parent=5 // pred_check
      _
    $region26: #{single_layer_forward.1} parent=5 // pred_check_branch
      %117 = sbr.rel (%p114) target = $region28
    $region27: #{single_layer_forward.1} parent=5 // pred_region
      %s118 = ssub.s32 %s8, 1
      %s119 = smul.u32 32, %s13
      %p120 = scmp.lt.s32.totalorder %s119, 63
      %s121 = scalar_select %p120, %s119, 63
      %s122 = smul.addr %s121, 4
      %s123 = scalar_lea.vmem %s0, %s122
      %p124 = pneg %p34
      %p125 = pneg %p31
      %p126 = pneg %p55
      %p127 = pneg %p52
      %p128 = pneg %p81
      %p129 = pneg %p78
      %s130 = smul.u32 32, %s13
      %p131 = scmp.lt.s32.totalorder %s130, 63
      %s132 = scalar_select %p131, %s130, 63
      %s133 = smul.addr %s132, 8
      %s134 = scalar_lea.vmem %s2, %s133
      %s135 = smul.u32 32, %s13
      %p136 = scmp.lt.s32.totalorder %s135, 63
      %s137 = scalar_select %p136, %s135, 63
      %s138 = smul.addr %s137, 4
      %s139 = scalar_lea.vmem %s0, %s138
      %s140 = smul.u32 32, %s13
      %s141 = smul.u32 32, %s13
      %p142 = scmp.lt.s32.totalorder %s141, 63
      %s143 = scalar_select %p142, %s141, 63
      %s144 = smul.addr %s143, 8
      %s145 = scalar_lea.vmem %s2, %s144
      %s146 = smul.u32 32, %s13
      %v148 = vld [vmem:[%s139] sm:$0xf]
      %v149 = vld [vmem:[%s139 + $0x4] sm:$0xf]
      %v150 = vld [vmem:[%s139 + $0x8] sm:$0xf]
      %v151 = vld [vmem:[%s139 + $0xc] sm:$0xf]
      %v152 = vld [vmem:[%s139 + $0x10] sm:$0xf]
      %v153 = vld [vmem:[%s139 + $0x14] sm:$0xf]
      %v154 = vld [vmem:[%s139 + $0x18] sm:$0xf]
      %v155 = vld [vmem:[%s139 + $0x1c] sm:$0xf]
      %v156 = vld [vmem:[%s139 + $0x20] sm:$0xf]
      %v157 = vld [vmem:[%s139 + $0x24] sm:$0xf]
      %v158 = vld [vmem:[%s139 + $0x28] sm:$0xf]
      %v159 = vld [vmem:[%s139 + $0x2c] sm:$0xf]
      %v160 = vld [vmem:[%s139 + $0x30] sm:$0xf]
      %v161 = vld [vmem:[%s139 + $0x34] sm:$0xf]
      %v162 = vld [vmem:[%s139 + $0x38] sm:$0xf]
      %v163 = vld [vmem:[%s139 + $0x3c] sm:$0xf]
      %v164 = vld [vmem:[%s139 + $0x40] sm:$0xf]
      %v165 = vld [vmem:[%s139 + $0x44] sm:$0xf]
      %v166 = vld [vmem:[%s139 + $0x48] sm:$0xf]
      %v167 = vld [vmem:[%s139 + $0x4c] sm:$0xf]
      %v168 = vld [vmem:[%s139 + $0x50] sm:$0xf]
      %v169 = vld [vmem:[%s139 + $0x54] sm:$0xf]
      %v170 = vld [vmem:[%s139 + $0x58] sm:$0xf]
      %v171 = vld [vmem:[%s139 + $0x5c] sm:$0xf]
      %v172 = vld [vmem:[%s139 + $0x60] sm:$0xf]
      %v173 = vld [vmem:[%s139 + $0x64] sm:$0xf]
      %v174 = vld [vmem:[%s139 + $0x68] sm:$0xf]
      %v175 = vld [vmem:[%s139 + $0x6c] sm:$0xf]
      %v176 = vld [vmem:[%s139 + $0x70] sm:$0xf]
      %v177 = vld [vmem:[%s139 + $0x74] sm:$0xf]
      %v178 = vld [vmem:[%s139 + $0x78] sm:$0xf]
      %v179 = vld [vmem:[%s139 + $0x7c] sm:$0xf]
      %v180 = vld [vmem:[%s1] sm:$0xf]
      %v181 = vld [vmem:[%s1 + $0x4] sm:$0xf]
      %v182 = vld [vmem:[%s1 + $0x8] sm:$0xf]
      %v183 = vld [vmem:[%s1 + $0xc] sm:$0xf]
      %v184 = vld [vmem:[%s1 + $0x10] sm:$0xf]
      %v185 = vld [vmem:[%s1 + $0x14] sm:$0xf]
      %v186 = vld [vmem:[%s1 + $0x18] sm:$0xf]
      %v187 = vld [vmem:[%s1 + $0x1c] sm:$0xf]
      %v188 = vld [vmem:[%s1 + $0x20] sm:$0xf]
      %v189 = vld [vmem:[%s1 + $0x24] sm:$0xf]
      %v190 = vld [vmem:[%s1 + $0x28] sm:$0xf]
      %v191 = vld [vmem:[%s1 + $0x2c] sm:$0xf]
      %v192 = vld [vmem:[%s1 + $0x30] sm:$0xf]
      %v193 = vld [vmem:[%s1 + $0x34] sm:$0xf]
      %v194 = vld [vmem:[%s1 + $0x38] sm:$0xf]
      %v195 = vld [vmem:[%s1 + $0x3c] sm:$0xf]
      %v228 = vunpack.c.l.b16 %v148
      %v229 = vunpack.c.l.b16 %v149
      %v230 = vunpack.c.l.b16 %v150
      %v231 = vunpack.c.l.b16 %v151
      %v232 = vunpack.c.l.b16 %v152
      %v233 = vunpack.c.l.b16 %v153
      %v234 = vunpack.c.l.b16 %v154
      %v235 = vunpack.c.l.b16 %v155
      %v236 = vunpack.c.l.b16 %v156
      %v237 = vunpack.c.l.b16 %v157
      %v238 = vunpack.c.l.b16 %v158
      %v239 = vunpack.c.l.b16 %v159
      %v240 = vunpack.c.l.b16 %v160
      %v241 = vunpack.c.l.b16 %v161
      %v242 = vunpack.c.l.b16 %v162
      %v243 = vunpack.c.l.b16 %v163
      %v244 = vunpack.c.l.b16 %v164
      %v245 = vunpack.c.l.b16 %v165
      %v246 = vunpack.c.l.b16 %v166
      %v247 = vunpack.c.l.b16 %v167
      %v248 = vunpack.c.l.b16 %v168
      %v249 = vunpack.c.l.b16 %v169
      %v250 = vunpack.c.l.b16 %v170
      %v251 = vunpack.c.l.b16 %v171
      %v252 = vunpack.c.l.b16 %v172
      %v253 = vunpack.c.l.b16 %v173
      %v254 = vunpack.c.l.b16 %v174
      %v255 = vunpack.c.l.b16 %v175
      %v256 = vunpack.c.l.b16 %v176
      %v257 = vunpack.c.l.b16 %v177
      %v258 = vunpack.c.l.b16 %v178
      %v259 = vunpack.c.l.b16 %v179
      %v260 = vpack.c.b16 %v229, %v228
      %v261 = vpack.c.b16 %v231, %v230
      %v262 = vpack.c.b16 %v233, %v232
      %v263 = vpack.c.b16 %v235, %v234
      %v264 = vpack.c.b16 %v237, %v236
      %v265 = vpack.c.b16 %v239, %v238
      %v266 = vpack.c.b16 %v241, %v240
      %v267 = vpack.c.b16 %v243, %v242
      %v268 = vpack.c.b16 %v245, %v244
      %v269 = vpack.c.b16 %v247, %v246
      %v270 = vpack.c.b16 %v249, %v248
      %v271 = vpack.c.b16 %v251, %v250
      %v272 = vpack.c.b16 %v253, %v252
      %v273 = vpack.c.b16 %v255, %v254
      %v274 = vpack.c.b16 %v257, %v256
      %v275 = vpack.c.b16 %v259, %v258
      %v308 = vunpack.c.l.b16 %v180
      %v309 = vunpack.c.l.b16 %v181
      %v310 = vunpack.c.l.b16 %v182
      %v311 = vunpack.c.l.b16 %v183
      %v312 = vunpack.c.l.b16 %v184
      %v313 = vunpack.c.l.b16 %v185
      %v314 = vunpack.c.l.b16 %v186
      %v315 = vunpack.c.l.b16 %v187
      %v316 = vunpack.c.l.b16 %v188
      %v317 = vunpack.c.l.b16 %v189
      %v318 = vunpack.c.l.b16 %v190
      %v319 = vunpack.c.l.b16 %v191
      %v320 = vunpack.c.l.b16 %v192
      %v321 = vunpack.c.l.b16 %v193
      %v322 = vunpack.c.l.b16 %v194
      %v323 = vunpack.c.l.b16 %v195
      %v324 = vpack.c.b16 %v309, %v308
      %v325 = vpack.c.b16 %v311, %v310
      %v326 = vpack.c.b16 %v313, %v312
      %v327 = vpack.c.b16 %v315, %v314
      %v328 = vpack.c.b16 %v317, %v316
      %v329 = vpack.c.b16 %v319, %v318
      %v330 = vpack.c.b16 %v321, %v320
      %v331 = vpack.c.b16 %v323, %v322
      %340 = vmatprep.subr.bf16.mxu0 0
      %341 = vmatpush1.bf16.msra.mxu0 %v324
      %342 = vmatprep.subr.bf16.mxu0 0
      %343 = vmatpush1.bf16.msra.mxu0 %v325
      %344 = vmatprep.subr.bf16.mxu0 0
      %345 = vmatpush1.bf16.msra.mxu0 %v326
      %346 = vmatprep.subr.bf16.mxu0 0
      %347 = vmatpush1.bf16.msra.mxu0 %v327
      %348 = vmatprep.subr.bf16.mxu0 0
      %349 = vmatpush1.bf16.msra.mxu0 %v328
      %350 = vmatprep.subr.bf16.mxu0 0
      %351 = vmatpush1.bf16.msra.mxu0 %v329
      %352 = vmatprep.subr.bf16.mxu0 0
      %353 = vmatpush1.bf16.msra.mxu0 %v330
      %354 = vmatprep.subr.bf16.mxu0 0
      %355 = vmatpush1.bf16.msra.mxu0 %v331
      %356 = vmatprep.subr.bf16.mxu0 0
      %357 = vmatpush1.bf16.msra.mxu0 0
      %358 = vmatprep.subr.bf16.mxu0 0
      %359 = vmatpush1.bf16.msra.mxu0 0
      %360 = vmatprep.subr.bf16.mxu0 0
      %361 = vmatpush1.bf16.msra.mxu0 0
      %362 = vmatprep.subr.bf16.mxu0 0
      %363 = vmatpush1.bf16.msra.mxu0 0
      %364 = vmatprep.subr.bf16.mxu0 0
      %365 = vmatpush1.bf16.msra.mxu0 0
      %366 = vmatprep.subr.bf16.mxu0 0
      %367 = vmatpush1.bf16.msra.mxu0 0
      %368 = vmatprep.subr.bf16.mxu0 0
      %369 = vmatpush1.bf16.msra.mxu0 0
      %370 = vmatprep.subr.bf16.mxu0 0
      %371 = vmatpush1.bf16.msra.mxu0 0
      %372 = vmatprep.mubr.bf16.mxu0 0
      %373 = vmatmul.mubr.bf16.gmra.mrb[0].mxu0 %v260
      %v374 = vpop.f32.mrb[0].mxu0
      %v375 = vadd.f32 0.0, %v374
      %v376 = vpop.f32.mrb[0].mxu0
      %v377 = vpop.f32.mrb[0].mxu0
      %v378 = vadd.f32 0.0, %v377
      %v379 = vpop.f32.mrb[0].mxu0
      %380 = vmatprep.mubr.bf16.mxu0 0
      %381 = vmatmul.mubr.bf16.gmra.mrb[0].mxu0 %v261
      %v382 = vpop.f32.mrb[0].mxu0
      %v383 = vadd.f32 0.0, %v382
      %v384 = vpop.f32.mrb[0].mxu0
      %v385 = vpop.f32.mrb[0].mxu0
      %v386 = vadd.f32 0.0, %v385
      %v387 = vpop.f32.mrb[0].mxu0
      %388 = vmatprep.mubr.bf16.mxu0 0
      %389 = vmatmul.mubr.bf16.gmra.mrb[0].mxu0 %v262
      %v390 = vpop.f32.mrb[0].mxu0
      %v391 = vadd.f32 0.0, %v390
      %v392 = vpop.f32.mrb[0].mxu0
      %v393 = vpop.f32.mrb[0].mxu0
      %v394 = vadd.f32 0.0, %v393
      %v395 = vpop.f32.mrb[0].mxu0
      %396 = vmatprep.mubr.bf16.mxu0 0
      %397 = vmatmul.mubr.bf16.gmra.mrb[0].mxu0 %v263
      %v398 = vpop.f32.mrb[0].mxu0
      %v399 = vadd.f32 0.0, %v398
      %v400 = vpop.f32.mrb[0].mxu0
      %v401 = vpop.f32.mrb[0].mxu0
      %v402 = vadd.f32 0.0, %v401
      %v403 = vpop.f32.mrb[0].mxu0
      %404 = vmatprep.mubr.bf16.mxu0 0
      %405 = vmatmul.mubr.bf16.gmra.mrb[0].mxu0 %v264
      %v406 = vpop.f32.mrb[0].mxu0
      %v407 = vadd.f32 0.0, %v406
      %v408 = vpop.f32.mrb[0].mxu0
      %v409 = vpop.f32.mrb[0].mxu0
      %v410 = vadd.f32 0.0, %v409
      %v411 = vpop.f32.mrb[0].mxu0
      %412 = vmatprep.mubr.bf16.mxu0 0
      %413 = vmatmul.mubr.bf16.gmra.mrb[0].mxu0 %v265
      %v414 = vpop.f32.mrb[0].mxu0
      %v415 = vadd.f32 0.0, %v414
      %v416 = vpop.f32.mrb[0].mxu0
      %v417 = vpop.f32.mrb[0].mxu0
      %v418 = vadd.f32 0.0, %v417
      %v419 = vpop.f32.mrb[0].mxu0
      %420 = vmatprep.mubr.bf16.mxu0 0
      %421 = vmatmul.mubr.bf16.gmra.mrb[0].mxu0 %v266
      %v422 = vpop.f32.mrb[0].mxu0
      %v423 = vadd.f32 0.0, %v422
      %v424 = vpop.f32.mrb[0].mxu0
      %v425 = vpop.f32.mrb[0].mxu0
      %v426 = vadd.f32 0.0, %v425
      %v427 = vpop.f32.mrb[0].mxu0
      %428 = vmatprep.mubr.bf16.mxu0 0
      %429 = vmatmul.mubr.bf16.gmra.mrb[0].mxu0 %v267
      %v430 = vpop.f32.mrb[0].mxu0
      %v431 = vadd.f32 0.0, %v430
      %v432 = vpop.f32.mrb[0].mxu0
      %v433 = vpop.f32.mrb[0].mxu0
      %v434 = vadd.f32 0.0, %v433
      %v435 = vpop.f32.mrb[0].mxu0
      %436 = vmatprep.mubr.bf16.mxu0 0
      %437 = vmatmul.mubr.bf16.gmra.mrb[0].mxu0 %v268
      %v438 = vpop.f32.mrb[0].mxu0
      %v439 = vadd.f32 0.0, %v438
      %v440 = vpop.f32.mrb[0].mxu0
      %v441 = vpop.f32.mrb[0].mxu0
      %v442 = vadd.f32 0.0, %v441
      %v443 = vpop.f32.mrb[0].mxu0
      %444 = vmatprep.mubr.bf16.mxu0 0
      %445 = vmatmul.mubr.bf16.gmra.mrb[0].mxu0 %v269
      %v446 = vpop.f32.mrb[0].mxu0
      %v447 = vadd.f32 0.0, %v446
      %v448 = vpop.f32.mrb[0].mxu0
      %v449 = vpop.f32.mrb[0].mxu0
      %v450 = vadd.f32 0.0, %v449
      %v451 = vpop.f32.mrb[0].mxu0
      %452 = vmatprep.mubr.bf16.mxu0 0
      %453 = vmatmul.mubr.bf16.gmra.mrb[0].mxu0 %v270
      %v454 = vpop.f32.mrb[0].mxu0
      %v455 = vadd.f32 0.0, %v454
      %v456 = vpop.f32.mrb[0].mxu0
      %v457 = vpop.f32.mrb[0].mxu0
      %v458 = vadd.f32 0.0, %v457
      %v459 = vpop.f32.mrb[0].mxu0
      %460 = vmatprep.mubr.bf16.mxu0 0
      %461 = vmatmul.mubr.bf16.gmra.mrb[0].mxu0 %v271
      %v462 = vpop.f32.mrb[0].mxu0
      %v463 = vadd.f32 0.0, %v462
      %v464 = vpop.f32.mrb[0].mxu0
      %v465 = vpop.f32.mrb[0].mxu0
      %v466 = vadd.f32 0.0, %v465
      %v467 = vpop.f32.mrb[0].mxu0
      %468 = vmatprep.mubr.bf16.mxu0 0
      %469 = vmatmul.mubr.bf16.gmra.mrb[0].mxu0 %v272
      %v470 = vpop.f32.mrb[0].mxu0
      %v471 = vadd.f32 0.0, %v470
      %v472 = vpop.f32.mrb[0].mxu0
      %v473 = vpop.f32.mrb[0].mxu0
      %v474 = vadd.f32 0.0, %v473
      %v475 = vpop.f32.mrb[0].mxu0
      %476 = vmatprep.mubr.bf16.mxu0 0
      %477 = vmatmul.mubr.bf16.gmra.mrb[0].mxu0 %v273
      %v478 = vpop.f32.mrb[0].mxu0
      %v479 = vadd.f32 0.0, %v478
      %v480 = vpop.f32.mrb[0].mxu0
      %v481 = vpop.f32.mrb[0].mxu0
      %v482 = vadd.f32 0.0, %v481
      %v483 = vpop.f32.mrb[0].mxu0
      %484 = vmatprep.mubr.bf16.mxu0 0
      %485 = vmatmul.mubr.bf16.gmra.mrb[0].mxu0 %v274
      %v486 = vpop.f32.mrb[0].mxu0
      %v487 = vadd.f32 0.0, %v486
      %v488 = vpop.f32.mrb[0].mxu0
      %v489 = vpop.f32.mrb[0].mxu0
      %v490 = vadd.f32 0.0, %v489
      %v491 = vpop.f32.mrb[0].mxu0
      %492 = vmatprep.mubr.bf16.mxu0 0
      %493 = vmatmul.mubr.bf16.gmra.mrb[0].mxu0 %v275
      %v494 = vpop.f32.mrb[0].mxu0
      %v495 = vadd.f32 0.0, %v494
      %v496 = vpop.f32.mrb[0].mxu0
      %v497 = vpop.f32.mrb[0].mxu0
      %v498 = vadd.f32 0.0, %v497
      %v499 = vpop.f32.mrb[0].mxu0
      %500 = vdwg.mxu0
      %501 = vst [vmem:[%s145] sm:$0xff] %v375
      %502 = vst [vmem:[%s145 + $0x8] sm:$0xff] %v378
      %503 = vst [vmem:[%s145 + $0x10] sm:$0xff] %v383
      %504 = vst [vmem:[%s145 + $0x18] sm:$0xff] %v386
      %505 = vst [vmem:[%s145 + $0x20] sm:$0xff] %v391
      %506 = vst [vmem:[%s145 + $0x28] sm:$0xff] %v394
      %507 = vst [vmem:[%s145 + $0x30] sm:$0xff] %v399
      %508 = vst [vmem:[%s145 + $0x38] sm:$0xff] %v402
      %509 = vst [vmem:[%s145 + $0x40] sm:$0xff] %v407
      %510 = vst [vmem:[%s145 + $0x48] sm:$0xff] %v410
      %511 = vst [vmem:[%s145 + $0x50] sm:$0xff] %v415
      %512 = vst [vmem:[%s145 + $0x58] sm:$0xff] %v418
      %513 = vst [vmem:[%s145 + $0x60] sm:$0xff] %v423
      %514 = vst [vmem:[%s145 + $0x68] sm:$0xff] %v426
      %515 = vst [vmem:[%s145 + $0x70] sm:$0xff] %v431
      %516 = vst [vmem:[%s145 + $0x78] sm:$0xff] %v434
      %517 = vst [vmem:[%s145 + $0x80] sm:$0xff] %v439
      %518 = vst [vmem:[%s145 + $0x88] sm:$0xff] %v442
      %519 = vst [vmem:[%s145 + $0x90] sm:$0xff] %v447
      %520 = vst [vmem:[%s145 + $0x98] sm:$0xff] %v450
      %521 = vst [vmem:[%s145 + $0xa0] sm:$0xff] %v455
      %522 = vst [vmem:[%s145 + $0xa8] sm:$0xff] %v458
      %523 = vst [vmem:[%s145 + $0xb0] sm:$0xff] %v463
      %524 = vst [vmem:[%s145 + $0xb8] sm:$0xff] %v466
      %525 = vst [vmem:[%s145 + $0xc0] sm:$0xff] %v471
      %526 = vst [vmem:[%s145 + $0xc8] sm:$0xff] %v474
      %527 = vst [vmem:[%s145 + $0xd0] sm:$0xff] %v479
      %528 = vst [vmem:[%s145 + $0xd8] sm:$0xff] %v482
      %529 = vst [vmem:[%s145 + $0xe0] sm:$0xff] %v487
      %530 = vst [vmem:[%s145 + $0xe8] sm:$0xff] %v490
      %531 = vst [vmem:[%s145 + $0xf0] sm:$0xff] %v495
      %532 = vst [vmem:[%s145 + $0xf8] sm:$0xff] %v498
      %s533 = smul.u32 32, %s13
      %p534 = scmp.lt.s32.totalorder %s533, 63
      %s535 = scalar_select %p534, %s533, 63
      %s536 = smul.addr %s535, 8
      %s537 = scalar_lea.vmem %s2, %s536
      // Predicated region
      $region29: #{single_layer_forward.1} parent=27 // pred_check
        %p538 = pneg %p78
      $region30: #{single_layer_forward.1} parent=27 // pred_check_branch
        %540 = sbr.rel (%p538) target = $region32
      $region31: #{single_layer_forward.1} parent=27 // pred_region
        %s541 = smul.u32 32, %s13
      $region32: #{single_layer_forward.1} parent=27 // pred_fallthru
        _
    $region28: #{single_layer_forward.1} parent=5 // pred_fallthru
      _
    %p542 = scmp.le.s32.totalorder 2, %s8
    // Predicated region
    $region33: #{single_layer_forward.1} parent=5 // pred_check
      %p543 = pneg %p542
    $region34: #{single_layer_forward.1} parent=5 // pred_check_branch
      %545 = sbr.rel (%p543) target = $region36
    $region35: #{single_layer_forward.1} parent=5 // pred_region
      %s546 = ssub.s32 %s8, 2
      // Predicated region
      $region37: #{single_layer_forward.1} parent=35 // pred_check
        %p547 = pneg %p84
      $region38: #{single_layer_forward.1} parent=35 // pred_check_branch
        %549 = sbr.rel (%p547) target = $region40
      $region39: #{single_layer_forward.1} parent=35 // pred_region
        %s550 = smul.u32 32, %s14
        %p551 = scmp.lt.s32.totalorder %s550, 63
        %s552 = scalar_select %p551, %s550, 63
        %s553 = smul.addr %s552, 8
        %s554 = scalar_lea.vmem %s2, %s553
      $region40: #{single_layer_forward.1} parent=35 // pred_fallthru
        _
    $region36: #{single_layer_forward.1} parent=5 // pred_fallthru
      _
  $region6: #{single_layer_forward.1} parent=0 // loop_footer
    %s12 = sadd.s32 1, %s8
  $region7: #{single_layer_forward.1} parent=0 // loop_footer_branch
    %7 = sbr.rel target = $region3
  $region8: #{single_layer_forward.1} parent=0 // loop_exit
    _

</llo_original>
